<compile_context>
chip_gen: v6e
topology: v6e:2x2x1
jax: 0.10.0
libtpu: 0.0.40
codegen_flags: <defaults>
</compile_context>

<pallas_src>
import jax
import jax.numpy as jnp
import numpy as np
from jax.experimental import pallas as pl
from jax.experimental.pallas import tpu as pltpu


def _round_up(x, m):
    return ((x + m - 1) // m) * m


# ----------------------------- Pallas kernels --------------------------------
def _gemm_bias_kernel_ot(w_ref, a_ref, b_ref, o_ref):
    """O^T(Cout, tm) = W^T(Cout, Kp) @ A(Kp, tm) + bias   (lane-dense for Cout < 128)."""
    o_ref[...] = (jnp.dot(w_ref[...], a_ref[...],
                          preferred_element_type=jnp.float32)
                  + b_ref[...]).astype(o_ref.dtype)


def _gemm_bias_kernel_om(w_ref, a_ref, b_ref, o_ref):
    """Same GEMM, but transpose the tile in-kernel (XLU) and store (tm, Cout)."""
    acc = jnp.dot(w_ref[...], a_ref[...],
                  preferred_element_type=jnp.float32) + b_ref[...]
    o_ref[...] = acc.T.astype(o_ref.dtype)


def conv_embed_gemm(wt, a, bias_col, *, tm, out_channels_last):
    """Per-batch fused GEMM + bias for the patch-embedding conv.

    wt:       (Cout, Kp)     bf16 (K zero-padded)
    a:        (B, Kp, Mp)    bf16 im2col patches, per-batch columns (b, h, w)
    bias_col: (Cout, 1)      f32
    returns:  (B, Cout, Mp)  f32   if not out_channels_last
              (B, Mp, Cout)  f32   if out_channels_last
    """
    Cout, Kp = wt.shape
    B, Kp2, Mp = a.shape
    assert Kp == Kp2 and Mp % tm == 0
    n_m = Mp // tm
    grid = (B, n_m)

    in_specs = [
        pl.BlockSpec((Cout, Kp), lambda b, i: (0, 0)),         # W^T, fully resident
        pl.BlockSpec((None, Kp, tm), lambda b, i: (b, 0, i)),  # per-batch A tile
        pl.BlockSpec((Cout, 1), lambda b, i: (0, 0)),          # bias column
    ]
    if out_channels_last:
        kernel = _gemm_bias_kernel_om
        out_shape = jax.ShapeDtypeStruct((B, Mp, Cout), jnp.float32)
        out_spec = pl.BlockSpec((None, tm, Cout), lambda b, i: (b, i, 0))
    else:
        kernel = _gemm_bias_kernel_ot
        out_shape = jax.ShapeDtypeStruct((B, Cout, Mp), jnp.float32)
        out_spec = pl.BlockSpec((None, Cout, tm), lambda b, i: (b, 0, i))

    cost = pl.CostEstimate(
        flops=2 * B * Cout * Kp * Mp,
        transcendentals=0,
        bytes_accessed=(a.size * a.dtype.itemsize
                        + wt.size * wt.dtype.itemsize
                        + bias_col.size * bias_col.dtype.itemsize
                        + B * Mp * Cout * 4))

    # VMEM budget from the real (double-buffered) working set; no accumulator.
    work = 2 * (Kp * tm * 2          # A tile (bf16)
                + Cout * Kp * 2      # W^T (bf16)
                + Cout * 4           # bias
                + Cout * tm * 4)     # output tile (f32)
    vmem_limit = int(min(32 * 2**20, max(4 * 2**20, 2 * work)))

    return pl.pallas_call(
        kernel,
        out_shape=out_shape,
        grid=grid,
        in_specs=in_specs,
        out_specs=out_spec,
        compiler_params=pltpu.CompilerParams(
            dimension_semantics=("parallel", "parallel"),
            vmem_limit_bytes=vmem_limit),
        cost_estimate=cost,
    )(wt, a, bias_col)


# ----------------------------- tiling heuristics -----------------------------
def _pick_tiles(K, HW, itemsize=2, a_tile_budget=4 * 2**20):
    """Kp (bf16-sublane-padded K), tm (M tile), HWp (padded per-batch M)."""
    Kp = _round_up(K, 16)
    if Kp * HW * itemsize <= a_tile_budget:
        return Kp, HW, HW            # full per-batch block: no M pad, no M tiling
    tm = 2048                        # multiples of 128; >=512 KB A tiles preferred
    while tm > 512 and Kp * tm * itemsize > a_tile_budget:
        tm //= 2
    return Kp, tm, _round_up(HW, tm)


# ------------------------------- forward glue --------------------------------
def conv_embed_forward(x, weight, bias, *, patch_size=7, stride=4, padding=2):
    """Faithful ConvEmbed.forward.
    x: (B, Cin, H, W) f32; weight: (Cout, Cin, KH, KW) f32; bias: (Cout,) f32."""
    B, Cin, H, W = x.shape
    Cout, _, KH, KW = weight.shape
    K = Cin * KH * KW

    # im2col as ONE fused XLA patch-extraction copy, emitted directly in bf16,
    # K ordered (cin, kh, kw) -- matching the OIHW weight flatten.
    patches = jax.lax.conv_general_dilated_patches(
        x.astype(jnp.bfloat16), filter_shape=(KH, KW),
        window_strides=(stride, stride),
        padding=((padding, padding), (padding, padding)))     # (B, K, H_out, W_out)
    _, K_chk, H_out, W_out = patches.shape
    assert K_chk == K
    HW = H_out * W_out

    Kp, tm, HWp = _pick_tiles(K, HW)
    a = patches.reshape(B, K, HW)                             # free reshape, no transpose
    if (Kp, HWp) != (K, HW):
        a = jnp.pad(a, ((0, 0), (0, Kp - K), (0, HWp - HW)))  # K pad only in the common case

    wt = jnp.pad(weight.reshape(Cout, K).astype(jnp.bfloat16),
                 ((0, 0), (0, Kp - K)))                       # (Cout, Kp) bf16
    bias_col = bias.reshape(Cout, 1).astype(jnp.float32)

    out_channels_last = Cout >= 128                            # lane-dense either way
    out = conv_embed_gemm(wt, a, bias_col, tm=tm,
                          out_channels_last=out_channels_last)

    if out_channels_last:
        x_seq = out[:, :HW, :]                                 # (B, HW, Cout)
    else:
        x_seq = out[:, :, :HW].transpose(0, 2, 1)              # (B, HW, Cout)

    # rearrange(x, 'b c h w -> b (h w) c') on the NCHW conv output == x_seq.
    conv_nhwc = x_seq.reshape(B, H_out, W_out, Cout)           # == self.proj(x), NHWC
    # self.norm is None (norm_layer=None default) -> skipped.
    # rearrange(x, 'b (c h) w -> b c h w', h=H, w=W) *as literally written* splits
    # the sequence axis as (c=W_out, h=H_out) and requires embed_dim == W_out.
    assert Cout == W_out, (
        "einops pattern 'b (c h) w -> b c h w' (w=W) as written requires embed_dim == W_out")
    x_out = x_seq.reshape(B, W_out, H_out, Cout)
    return x_out, conv_nhwc


# --------------------------------- demo ---------------------------------------
if __name__ == "__main__":
    patch_size, in_chans, stride, padding = 7, 3, 4, 2
    B, H_in, W_in = 2, 64, 64
    H_out = (H_in + 2 * padding - patch_size) // stride + 1    # 16
    W_out = (W_in + 2 * padding - patch_size) // stride + 1    # 16
    embed_dim = W_out   # required by the module's literal second einops pattern

    key = jax.random.PRNGKey(0)
    kx, kw, kb = jax.random.split(key, 3)
    x = jax.random.normal(kx, (B, in_chans, H_in, W_in), dtype=jnp.float32)
    fan_in = in_chans * patch_size * patch_size
    bound = 1.0 / np.sqrt(fan_in)
    proj_weight = jax.random.uniform(kw, (embed_dim, in_chans, patch_size, patch_size),
                                     dtype=jnp.float32, minval=-bound, maxval=bound)
    proj_bias = jax.random.uniform(kb, (embed_dim,), dtype=jnp.float32,
                                   minval=-bound, maxval=bound)

    fwd = jax.jit(lambda a, w, b: conv_embed_forward(
        a, w, b, patch_size=patch_size, stride=stride, padding=padding))
    x_out, conv_nhwc = fwd(x, proj_weight, proj_bias)
    x_out = jax.block_until_ready(x_out)

    # Correctness: Pallas conv (bf16 operands, f32 accumulation) vs XLA conv with
    # the same bf16 inputs / f32 accumulation.
    ref = jax.lax.conv_general_dilated(
        x.astype(jnp.bfloat16), proj_weight.astype(jnp.bfloat16),
        window_strides=(stride, stride),
        padding=((padding, padding), (padding, padding)),
        dimension_numbers=("NCHW", "OIHW", "NCHW"),
        preferred_element_type=jnp.float32) + proj_bias[None, :, None, None]
    ref_nhwc = jnp.transpose(ref, (0, 2, 3, 1))
    err = float(np.abs(np.asarray(conv_nhwc) - np.asarray(ref_nhwc)).max())
    assert np.allclose(np.asarray(conv_nhwc), np.asarray(ref_nhwc),
                       rtol=2e-2, atol=2e-3), f"max abs err = {err}"
    assert x_out.shape == (B, W_out, H_out, embed_dim)

    # Also exercise the channels-last store path (Cout >= 128, later CvT stages):
    # in-kernel XLU transpose, output stored directly as (B, M, Cout).
    Cb, Kb, Mb, Bb = 128, 160, 256, 2
    kw2, ka2, kb2 = jax.random.split(jax.random.PRNGKey(1), 3)
    wt2 = jax.random.normal(kw2, (Cb, Kb), dtype=jnp.float32).astype(jnp.bfloat16)
    a2 = jax.random.normal(ka2, (Bb, Kb, Mb), dtype=jnp.float32).astype(jnp.bfloat16)
    b2 = jax.random.normal(kb2, (Cb, 1), dtype=jnp.float32)
    out2 = jax.jit(lambda w, a, b: conv_embed_gemm(
        w, a, b, tm=Mb, out_channels_last=True))(wt2, a2, b2)
    out2 = jax.block_until_ready(out2)
    ref2 = jnp.einsum("ck,bkm->bmc", wt2, a2,
                      preferred_element_type=jnp.float32) + b2[:, 0][None, None, :]
    err2 = float(np.abs(np.asarray(out2) - np.asarray(ref2)).max())
    assert np.allclose(np.asarray(out2), np.asarray(ref2),
                       rtol=1e-2, atol=1e-2), f"max abs err = {err2}"

    print("KERNEL_OK")
</pallas_src>

<mosaic_0001>
module attributes {stable_mosaic.version = 11 : i64} {
  func.func @_gemm_bias_kernel_ot(%arg0: i32, %arg1: i32, %arg2: memref<16x160xbf16, #tpu.memory_space<vmem>>, %arg3: memref<1x160x256xbf16, #tpu.memory_space<vmem>>, %arg4: memref<16x1xf32, #tpu.memory_space<vmem>>, %arg5: memref<1x16x256xf32, #tpu.memory_space<vmem>>) attributes {dimension_semantics = [#tpu.dimension_semantics<parallel>, #tpu.dimension_semantics<parallel>], iteration_bounds = array<i64: 2, 1>, scalar_prefetch = 0 : i64, scratch_operands = 0 : i64, tpu.core_type = #tpu.core_type<tc>, window_params = [{pipeline_mode = #tpu.pipeline_mode<synchronous>, transform_indices = @transform_0, window_bounds = array<i64: 16, 160>}, {transform_indices = @transform_1, window_bounds = array<i64: 1, 160, 256>}, {pipeline_mode = #tpu.pipeline_mode<synchronous>, transform_indices = @transform_2, window_bounds = array<i64: 16, 1>}, {transform_indices = @transform_3, window_bounds = array<i64: 1, 16, 256>}]} {
    %c0 = arith.constant 0 : index
    %c0_0 = arith.constant 0 : index
    %0 = vector.load %arg2[%c0, %c0_0] : memref<16x160xbf16, #tpu.memory_space<vmem>>, vector<16x160xbf16>
    %c0_1 = arith.constant 0 : index
    %c0_2 = arith.constant 0 : index
    %c0_3 = arith.constant 0 : index
    %1 = vector.load %arg3[%c0_1, %c0_2, %c0_3] : memref<1x160x256xbf16, #tpu.memory_space<vmem>>, vector<1x160x256xbf16>
    %2 = vector.shape_cast %1 : vector<1x160x256xbf16> to vector<160x256xbf16>
    %cst = arith.constant dense<0.000000e+00> : vector<16x256xf32>
    %3 = tpu.matmul %0, %2, %cst {dimension_numbers = #tpu.dot_dimension_numbers<[1], [0], [0], [1], [0, 0, 1, 1], [], []>} : vector<16x160xbf16>, vector<160x256xbf16>, vector<16x256xf32> -> vector<16x256xf32>
    %c0_4 = arith.constant 0 : index
    %c0_5 = arith.constant 0 : index
    %4 = vector.load %arg4[%c0_4, %c0_5] : memref<16x1xf32, #tpu.memory_space<vmem>>, vector<16x1xf32>
    %5 = vector.broadcast %4 : vector<16x1xf32> to vector<16x256xf32>
    %6 = arith.addf %3, %5 : vector<16x256xf32>
    %c0_6 = arith.constant 0 : index
    %c0_7 = arith.constant 0 : index
    %c0_8 = arith.constant 0 : index
    %7 = vector.load %arg5[%c0_6, %c0_7, %c0_8] : memref<1x16x256xf32, #tpu.memory_space<vmem>>, vector<1x16x256xf32>
    %8 = vector.shape_cast %7 : vector<1x16x256xf32> to vector<16x256xf32>
    %9 = vector.shape_cast %6 : vector<16x256xf32> to vector<1x16x256xf32>
    tpu.vector_store %arg5[%c0_6, %c0_7, %c0_8], %9 {strides = array<i32>} : memref<1x16x256xf32, #tpu.memory_space<vmem>>, vector<1x16x256xf32>,
    return
  }
  func.func @transform_0(%arg0: i32, %arg1: i32) -> (i32, i32) {
    %c0_i32 = arith.constant 0 : i32
    %c0_i32_0 = arith.constant 0 : i32
    %c0_i32_1 = arith.constant 0 : i32
    return %c0_i32, %c0_i32_0 : i32, i32
  }
  func.func @transform_1(%arg0: i32, %arg1: i32) -> (i32, i32, i32) {
    %c0_i32 = arith.constant 0 : i32
    %c0_i32_0 = arith.constant 0 : i32
    return %arg0, %c0_i32, %arg1 : i32, i32, i32
  }
  func.func @transform_2(%arg0: i32, %arg1: i32) -> (i32, i32) {
    %c0_i32 = arith.constant 0 : i32
    %c0_i32_0 = arith.constant 0 : i32
    %c0_i32_1 = arith.constant 0 : i32
    return %c0_i32, %c0_i32_0 : i32, i32
  }
  func.func @transform_3(%arg0: i32, %arg1: i32) -> (i32, i32, i32) {
    %c0_i32 = arith.constant 0 : i32
    %c0_i32_0 = arith.constant 0 : i32
    return %arg0, %c0_i32, %arg1 : i32, i32, i32
  }
}

</mosaic_0001>

<llo_original>
// kernel: _lambda_.1
$region0: #{_lambda_.1}
  #allocation0 [shape = 'u32[]', space=smem, size = 0x4, offset = 0x4, fixed_abs, tag = 'smem constant byte address 0x4 - core index']
  #allocation1 [shape = 'u32[144,128]{1,0:T(1,128)}', space=vmem, size = 0x12000, scoped, tag = 'internal scratch']
  %s0 = inlined_call_operand.vmem [shape: bf16[16,160], index: 0, kind: input, shape index: {}]
  %s1 = inlined_call_operand.vmem [shape: bf16[2,160,256], index: 1, kind: input, shape index: {}]
  %s2 = inlined_call_operand.vmem [shape: f32[16,1], index: 2, kind: input, shape index: {}]
  %s3 = inlined_call_operand.vmem [shape: f32[2,16,256], index: 3, kind: output, shape index: {}]
  %s4 = sld [smem:[#allocation0]]
  $region45: #{_lambda_.1} parent=0
    _
  %s6 = ssub.s32 1, %s4
  %s7 = scalar_select 0, %s6, %s4
  loop: start=0, step=1, limit=4
  $region2: #{_lambda_.1} parent=0 // loop_pre_header
    _
  $region3: #{_lambda_.1} parent=0 // loop_header
    %s9 = sphi 0, %s13
    %p10 = scmp.ge.s32.totalorder %s9, 4
    %s16 = sphi 0, %s28
    %s17 = sphi 0, %s24
    %s18 = sphi 0, %s16
    %s19 = sphi 0, %s17
    %s20 = sphi 0, %s18
    %s21 = sphi 0, %s19
    %s29 = sphi 0, %s29
    %s31 = sphi 0, %s29
    %s32 = sphi 0, %s31
    %s46 = sphi 0, %s32
    %s54 = sphi 0, %s56
    %s57 = sphi 0, %s54
    %s58 = sphi 0, %s57
    %s74 = sphi 0, %s58
    %s78 = sphi 0, %s78
    %s80 = sphi 0, %s78
    %s81 = sphi 0, %s80
    %s95 = sphi 0, %s81
    %s103 = sphi 0, %s105
    %s106 = sphi 0, %s103
    %s107 = sphi 0, %s106
    %s123 = sphi 0, %s107
  $region4: #{_lambda_.1} parent=0 // loop_header_branch
    %12 = sbr.rel (%p10) target = $region8
  $region5: #{_lambda_.1} parent=0 // loop_body
    %s14 = ssub.s32 %s9, 1
    %s15 = ssub.s32 %s9, 2
    %s22 = sadd.s32 1, %s17
    %p23 = scmp.ge.s32.totalorder %s22, 1
    %s24 = scalar_select %p23, 0, %s22
    %s25 = sadd.s32 1, %s16
    %s26 = scalar_select %p23, %s25, %s16
    %p27 = scmp.ge.s32.totalorder %s26, 2
    %s28 = scalar_select %p27, 0, %s26
    %s30 = sadd.s32 %s29, 1
    %p33 = scmp.eq.s32.totalorder %s9, 1
    %p34 = scmp.ne.s32.totalorder %s29, %s31
    %p35 = scmp.eq.s32.totalorder %s9, 0
    %p36 = por %p34, %p35
    %p37 = scmp.ne.s32.totalorder %s29, %s31
    %p38 = scmp.eq.s32.totalorder %s14, 1
    %p39 = por %p37, %p38
    %p40 = scmp.ne.s32.totalorder %s31, %s32
    %p41 = scmp.eq.s32.totalorder %s14, 0
    %p42 = por %p40, %p41
    %p43 = scmp.ne.s32.totalorder %s31, %s32
    %p44 = scmp.eq.s32.totalorder %s15, 1
    %p45 = por %p43, %p44
    %p47 = scmp.ne.s32.totalorder %s32, %s46
    %p48 = scmp.eq.s32.totalorder %s15, 0
    %p49 = por %p47, %p48
    %s50 = ssub.s32 %s16, %s28
    %s51 = ssub.s32 %s17, %s24
    %s52 = sor.u32 %s50, %s51
    %p53 = scmp.eq.s32.totalorder %s52, 0
    %s55 = sadd.s32 %s54, 1
    %s56 = scalar_select %p53, %s54, %s55
    %p59 = pneg %p53
    %p60 = scmp.eq.s32.totalorder %s9, 1
    %p61 = por %p59, %p60
    %p62 = scmp.ne.s32.totalorder %s54, %s57
    %p63 = scmp.eq.s32.totalorder %s9, 0
    %p64 = por %p62, %p63
    %p65 = scmp.ne.s32.totalorder %s54, %s57
    %p66 = scmp.eq.s32.totalorder %s14, 1
    %p67 = por %p65, %p66
    %p68 = scmp.ne.s32.totalorder %s57, %s58
    %p69 = scmp.eq.s32.totalorder %s14, 0
    %p70 = por %p68, %p69
    %p71 = scmp.ne.s32.totalorder %s57, %s58
    %p72 = scmp.eq.s32.totalorder %s15, 1
    %p73 = por %p71, %p72
    %p75 = scmp.ne.s32.totalorder %s58, %s74
    %p76 = scmp.eq.s32.totalorder %s15, 0
    %p77 = por %p75, %p76
    %s79 = sadd.s32 %s78, 1
    %p82 = scmp.eq.s32.totalorder %s9, 1
    %p83 = scmp.ne.s32.totalorder %s78, %s80
    %p84 = scmp.eq.s32.totalorder %s9, 0
    %p85 = por %p83, %p84
    %p86 = scmp.ne.s32.totalorder %s78, %s80
    %p87 = scmp.eq.s32.totalorder %s14, 1
    %p88 = por %p86, %p87
    %p89 = scmp.ne.s32.totalorder %s80, %s81
    %p90 = scmp.eq.s32.totalorder %s14, 0
    %p91 = por %p89, %p90
    %p92 = scmp.ne.s32.totalorder %s80, %s81
    %p93 = scmp.eq.s32.totalorder %s15, 1
    %p94 = por %p92, %p93
    %p96 = scmp.ne.s32.totalorder %s81, %s95
    %p97 = scmp.eq.s32.totalorder %s15, 0
    %p98 = por %p96, %p97
    %s99 = ssub.s32 %s16, %s28
    %s100 = ssub.s32 %s17, %s24
    %s101 = sor.u32 %s99, %s100
    %p102 = scmp.eq.s32.totalorder %s101, 0
    %s104 = sadd.s32 %s103, 1
    %s105 = scalar_select %p102, %s103, %s104
    %p108 = pneg %p102
    %p109 = scmp.eq.s32.totalorder %s9, 1
    %p110 = por %p108, %p109
    %p111 = scmp.ne.s32.totalorder %s103, %s106
    %p112 = scmp.eq.s32.totalorder %s9, 0
    %p113 = por %p111, %p112
    %p114 = scmp.ne.s32.totalorder %s103, %s106
    %p115 = scmp.eq.s32.totalorder %s14, 1
    %p116 = por %p114, %p115
    %p117 = scmp.ne.s32.totalorder %s106, %s107
    %p118 = scmp.eq.s32.totalorder %s14, 0
    %p119 = por %p117, %p118
    %p120 = scmp.ne.s32.totalorder %s106, %s107
    %p121 = scmp.eq.s32.totalorder %s15, 1
    %p122 = por %p120, %p121
    %p124 = scmp.ne.s32.totalorder %s107, %s123
    %p125 = scmp.eq.s32.totalorder %s15, 0
    %p126 = por %p124, %p125
    %p127 = scmp.le.s32.totalorder 1, %s9
    %p128 = scmp.lt.s32.totalorder %s9, 3
    %p129 = pnand %p127, %p128
    %p130 = pneg %p129
    // Predicated region
    $region9: #{_lambda_.1} parent=5 // pred_check
      _
    $region10: #{_lambda_.1} parent=5 // pred_check_branch
      %132 = sbr.rel (%p129) target = $region12
    $region11: #{_lambda_.1} parent=5 // pred_region
      %s133 = ssub.s32 %s9, 1
      // Predicated region
      $region13: #{_lambda_.1} parent=11 // pred_check
        %p134 = pneg %p42
      $region14: #{_lambda_.1} parent=11 // pred_check_branch
        %136 = sbr.rel (%p134) target = $region16
      $region15: #{_lambda_.1} parent=11 // pred_region
        _
      $region16: #{_lambda_.1} parent=11 // pred_fallthru
        _
      // Predicated region
      $region17: #{_lambda_.1} parent=11 // pred_check
        %p137 = pneg %p91
      $region18: #{_lambda_.1} parent=11 // pred_check_branch
        %139 = sbr.rel (%p137) target = $region20
      $region19: #{_lambda_.1} parent=11 // pred_region
        _
      $region20: #{_lambda_.1} parent=11 // pred_fallthru
        _
    $region12: #{_lambda_.1} parent=5 // pred_fallthru
      _
    %p140 = scmp.lt.s32.totalorder %s9, 2
    // Predicated region
    $region21: #{_lambda_.1} parent=5 // pred_check
      %p141 = pneg %p140
    $region22: #{_lambda_.1} parent=5 // pred_check_branch
      %143 = sbr.rel (%p141) target = $region24
    $region23: #{_lambda_.1} parent=5 // pred_region
      // Predicated region
      $region25: #{_lambda_.1} parent=23 // pred_check
        %p144 = pneg %p64
      $region26: #{_lambda_.1} parent=23 // pred_check_branch
        %146 = sbr.rel (%p144) target = $region28
      $region27: #{_lambda_.1} parent=23 // pred_region
        %s147 = smul.u32 2, %s17
        %p148 = scmp.lt.s32.totalorder %s16, 1
        %s149 = scalar_select %p148, %s16, 1
        %p150 = scmp.lt.s32.totalorder %s147, 1
        %s151 = scalar_select %p150, %s147, 1
        %s152 = smul.addr %s149, 40
        %s153 = sadd.s32 %s151, %s152
        %s154 = smul.addr %s153, 4
        %s155 = scalar_lea.vmem %s1, %s154
        %s156 = smul.u32 2, %s17
      $region28: #{_lambda_.1} parent=23 // pred_fallthru
        _
    $region24: #{_lambda_.1} parent=5 // pred_fallthru
      _
    %p157 = scmp.le.s32.totalorder 1, %s9
    %p158 = scmp.lt.s32.totalorder %s9, 3
    %p159 = pnand %p157, %p158
    %p160 = pneg %p159
    // Predicated region
    $region29: #{_lambda_.1} parent=5 // pred_check
      _
    $region30: #{_lambda_.1} parent=5 // pred_check_branch
      %162 = sbr.rel (%p159) target = $region32
    $region31: #{_lambda_.1} parent=5 // pred_region
      %s163 = ssub.s32 %s9, 1
      %p164 = pneg %p42
      %p165 = pneg %p39
      %s166 = smul.u32 2, %s19
      %p167 = scmp.lt.s32.totalorder %s18, 1
      %s168 = scalar_select %p167, %s18, 1
      %p169 = scmp.lt.s32.totalorder %s166, 1
      %s170 = scalar_select %p169, %s166, 1
      %s171 = smul.addr %s168, 40
      %s172 = sadd.s32 %s170, %s171
      %s173 = smul.addr %s172, 4
      %s174 = scalar_lea.vmem %s1, %s173
      %p175 = pneg %p70
      %p176 = pneg %p67
      %p177 = pneg %p91
      %p178 = pneg %p88
      %p179 = pneg %p119
      %p180 = pneg %p116
      %s181 = smul.u32 2, %s19
      %p182 = scmp.lt.s32.totalorder %s18, 1
      %s183 = scalar_select %p182, %s18, 1
      %p184 = scmp.lt.s32.totalorder %s181, 1
      %s185 = scalar_select %p184, %s181, 1
      %s186 = smul.addr %s183, 4
      %s187 = sadd.s32 %s185, %s186
      %s188 = smul.addr %s187, 8
      %s189 = scalar_lea.vmem %s3, %s188
      %s190 = smul.u32 2, %s19
      %p191 = scmp.lt.s32.totalorder %s18, 1
      %s192 = scalar_select %p191, %s18, 1
      %p193 = scmp.lt.s32.totalorder %s190, 1
      %s194 = scalar_select %p193, %s190, 1
      %s195 = smul.addr %s192, 40
      %s196 = sadd.s32 %s194, %s195
      %s197 = smul.addr %s196, 4
      %s198 = scalar_lea.vmem %s1, %s197
      %s199 = smul.u32 2, %s19
      %s200 = smul.u32 2, %s19
      %p201 = scmp.lt.s32.totalorder %s18, 1
      %s202 = scalar_select %p201, %s18, 1
      %p203 = scmp.lt.s32.totalorder %s200, 1
      %s204 = scalar_select %p203, %s200, 1
      %s205 = smul.addr %s202, 4
      %s206 = sadd.s32 %s204, %s205
      %s207 = smul.addr %s206, 8
      %s208 = scalar_lea.vmem %s3, %s207
      %s209 = smul.u32 2, %s19
      %v211 = vld [vmem:[%s0] sm:$0xff]
      %v212 = vld [vmem:[%s0 + $0x8] sm:$0xff]
      %v213 = vld [vmem:[%s198] sm:$0xff]
      %v214 = vld [vmem:[%s198 + $0x8] sm:$0xff]
      %v215 = vld [vmem:[%s198 + $0x10] sm:$0xff]
      %v216 = vld [vmem:[%s198 + $0x18] sm:$0xff]
      %v217 = vld [vmem:[%s198 + $0x20] sm:$0xff]
      %v218 = vld [vmem:[%s198 + $0x28] sm:$0xff]
      %v219 = vld [vmem:[%s198 + $0x30] sm:$0xff]
      %v220 = vld [vmem:[%s198 + $0x38] sm:$0xff]
      %v221 = vld [vmem:[%s198 + $0x40] sm:$0xff]
      %v222 = vld [vmem:[%s198 + $0x48] sm:$0xff]
      %v223 = vld [vmem:[%s198 + $0x50] sm:$0xff]
      %v224 = vld [vmem:[%s198 + $0x58] sm:$0xff]
      %v225 = vld [vmem:[%s198 + $0x60] sm:$0xff]
      %v226 = vld [vmem:[%s198 + $0x68] sm:$0xff]
      %v227 = vld [vmem:[%s198 + $0x70] sm:$0xff]
      %v228 = vld [vmem:[%s198 + $0x78] sm:$0xff]
      %v229 = vld [vmem:[%s198 + $0x80] sm:$0xff]
      %v230 = vld [vmem:[%s198 + $0x88] sm:$0xff]
      %v231 = vld [vmem:[%s198 + $0x90] sm:$0xff]
      %v232 = vld [vmem:[%s198 + $0x98] sm:$0xff]
      %v233 = vld [vmem:[%s2] sm:$0xff]
      %v234 = vld [vmem:[%s2 + $0x8] sm:$0xff]
      %236 = vset.pattern.permute.xlu0 0
      %237 = vperm.xlu0 %236, %v233
      %v238 = vpop.permute.xlu0 %237
      %241 = vset.pattern.permute.xlu0 0
      %242 = vperm.xlu0 %241, %v234
      %v243 = vpop.permute.xlu0 %242
      %v247 = vunpack.c.l.b16 %v211
      %v248 = vunpack.c.h.b16 %v211
      %v249 = vunpack.c.l.b16 %v212
      %v250 = vunpack.c.h.b16 %v212
      %v251 = vpack.c.b16 %v249, %v247
      %v252 = vpack.c.b16 %v250, %v248
      %v274 = vunpack.c.l.b16 %v213
      %v275 = vunpack.c.h.b16 %v213
      %v276 = vunpack.c.l.b16 %v214
      %v277 = vunpack.c.h.b16 %v214
      %v278 = vunpack.c.l.b16 %v215
      %v279 = vunpack.c.h.b16 %v215
      %v280 = vunpack.c.l.b16 %v216
      %v281 = vunpack.c.h.b16 %v216
      %v282 = vunpack.c.l.b16 %v217
      %v283 = vunpack.c.h.b16 %v217
      %v284 = vunpack.c.l.b16 %v218
      %v285 = vunpack.c.h.b16 %v218
      %v286 = vunpack.c.l.b16 %v219
      %v287 = vunpack.c.h.b16 %v219
      %v288 = vunpack.c.l.b16 %v220
      %v289 = vunpack.c.h.b16 %v220
      %v290 = vunpack.c.l.b16 %v221
      %v291 = vunpack.c.h.b16 %v221
      %v292 = vunpack.c.l.b16 %v222
      %v293 = vunpack.c.h.b16 %v222
      %v294 = vunpack.c.l.b16 %v223
      %v295 = vunpack.c.h.b16 %v223
      %v296 = vunpack.c.l.b16 %v224
      %v297 = vunpack.c.h.b16 %v224
      %v298 = vunpack.c.l.b16 %v225
      %v299 = vunpack.c.h.b16 %v225
      %v300 = vunpack.c.l.b16 %v226
      %v301 = vunpack.c.h.b16 %v226
      %v302 = vunpack.c.l.b16 %v227
      %v303 = vunpack.c.h.b16 %v227
      %v304 = vunpack.c.l.b16 %v228
      %v305 = vunpack.c.h.b16 %v228
      %v306 = vunpack.c.l.b16 %v229
      %v307 = vunpack.c.h.b16 %v229
      %v308 = vunpack.c.l.b16 %v230
      %v309 = vunpack.c.h.b16 %v230
      %v310 = vunpack.c.l.b16 %v231
      %v311 = vunpack.c.h.b16 %v231
      %v312 = vunpack.c.l.b16 %v232
      %v313 = vunpack.c.h.b16 %v232
      %v314 = vpack.c.b16 %v276, %v274
      %v315 = vpack.c.b16 %v277, %v275
      %v316 = vpack.c.b16 %v280, %v278
      %v317 = vpack.c.b16 %v281, %v279
      %v318 = vpack.c.b16 %v284, %v282
      %v319 = vpack.c.b16 %v285, %v283
      %v320 = vpack.c.b16 %v288, %v286
      %v321 = vpack.c.b16 %v289, %v287
      %v322 = vpack.c.b16 %v292, %v290
      %v323 = vpack.c.b16 %v293, %v291
      %v324 = vpack.c.b16 %v296, %v294
      %v325 = vpack.c.b16 %v297, %v295
      %v326 = vpack.c.b16 %v300, %v298
      %v327 = vpack.c.b16 %v301, %v299
      %v328 = vpack.c.b16 %v304, %v302
      %v329 = vpack.c.b16 %v305, %v303
      %v330 = vpack.c.b16 %v308, %v306
      %v331 = vpack.c.b16 %v309, %v307
      %v332 = vpack.c.b16 %v312, %v310
      %v333 = vpack.c.b16 %v313, %v311
      %vm354 = vcmask 261120
      %v356 = vsel %vm354, %v252, 0
      %358 = vmatprep.subr.bf16.mxu0 %v329
      %359 = vmatpush1.bf16.msra.mxu0 %v328
      %360 = vmatprep.subr.bf16.mxu0 %v327
      %361 = vmatpush1.bf16.msra.mxu0 %v326
      %362 = vmatprep.subr.bf16.mxu0 %v325
      %363 = vmatpush1.bf16.msra.mxu0 %v324
      %364 = vmatprep.subr.bf16.mxu0 %v323
      %365 = vmatpush1.bf16.msra.mxu0 %v322
      %366 = vmatprep.subr.bf16.mxu0 %v321
      %367 = vmatpush1.bf16.msra.mxu0 %v320
      %368 = vmatprep.subr.bf16.mxu0 %v319
      %369 = vmatpush1.bf16.msra.mxu0 %v318
      %370 = vmatprep.subr.bf16.mxu0 %v317
      %371 = vmatpush1.bf16.msra.mxu0 %v316
      %372 = vmatprep.subr.bf16.mxu0 %v315
      %373 = vmatpush1.bf16.msra.mxu0 %v314
      %374 = vmatprep.subr.bf16.mxu0 0
      %375 = vmatpush2.bf16.msra.mxu0 0
      %376 = vmatprep.subr.bf16.mxu0 0
      %377 = vmatpush2.bf16.msra.mxu0 0
      %378 = vmatprep.subr.bf16.mxu0 0
      %379 = vmatpush2.bf16.msra.mxu0 0
      %380 = vmatprep.subr.bf16.mxu0 0
      %381 = vmatpush2.bf16.msra.mxu0 0
      %382 = vmatprep.subr.bf16.mxu0 0
      %383 = vmatpush2.bf16.msra.mxu0 0
      %384 = vmatprep.subr.bf16.mxu0 0
      %385 = vmatpush2.bf16.msra.mxu0 0
      %386 = vmatprep.subr.bf16.mxu0 %v333
      %387 = vmatpush2.bf16.msra.mxu0 %v332
      %388 = vmatprep.subr.bf16.mxu0 %v331
      %389 = vmatpush2.bf16.msra.mxu0 %v330
      %390 = vmatprep.mubr.bf16.mxu0 %v356
      %391 = vmatmul.mubr.bf16.gmra.mxu0 %v251
      %v392 = vpop.f32.mrf.mxu0
      %v393 = vadd.f32 %v238, %v392
      %v394 = vpop.f32.mrf.mxu0
      %v395 = vadd.f32 %v238, %v394
      %v396 = vpop.f32.mrf.mxu0
      %v397 = vadd.f32 %v243, %v396
      %v398 = vpop.f32.mrf.mxu0
      %v399 = vadd.f32 %v243, %v398
      %400 = vdwg.mxu0
      %401 = vst [vmem:[%s208] sm:$0xff] %v393
      %402 = vst [vmem:[%s208 + $0x8] sm:$0xff] %v395
      %403 = vst [vmem:[%s208 + $0x10] sm:$0xff] %v397
      %404 = vst [vmem:[%s208 + $0x18] sm:$0xff] %v399
      %s405 = smul.u32 2, %s19
      %p406 = scmp.lt.s32.totalorder %s18, 1
      %s407 = scalar_select %p406, %s18, 1
      %p408 = scmp.lt.s32.totalorder %s405, 1
      %s409 = scalar_select %p408, %s405, 1
      %s410 = smul.addr %s407, 4
      %s411 = sadd.s32 %s409, %s410
      %s412 = smul.addr %s411, 8
      %s413 = scalar_lea.vmem %s3, %s412
      // Predicated region
      $region33: #{_lambda_.1} parent=31 // pred_check
        %p414 = pneg %p116
      $region34: #{_lambda_.1} parent=31 // pred_check_branch
        %416 = sbr.rel (%p414) target = $region36
      $region35: #{_lambda_.1} parent=31 // pred_region
        %s417 = smul.u32 2, %s19
      $region36: #{_lambda_.1} parent=31 // pred_fallthru
        _
    $region32: #{_lambda_.1} parent=5 // pred_fallthru
      _
    %p418 = scmp.le.s32.totalorder 2, %s9
    // Predicated region
    $region37: #{_lambda_.1} parent=5 // pred_check
      %p419 = pneg %p418
    $region38: #{_lambda_.1} parent=5 // pred_check_branch
      %421 = sbr.rel (%p419) target = $region40
    $region39: #{_lambda_.1} parent=5 // pred_region
      %s422 = ssub.s32 %s9, 2
      // Predicated region
      $region41: #{_lambda_.1} parent=39 // pred_check
        %p423 = pneg %p122
      $region42: #{_lambda_.1} parent=39 // pred_check_branch
        %425 = sbr.rel (%p423) target = $region44
      $region43: #{_lambda_.1} parent=39 // pred_region
        %s426 = smul.u32 2, %s21
        %p427 = scmp.lt.s32.totalorder %s20, 1
        %s428 = scalar_select %p427, %s20, 1
        %p429 = scmp.lt.s32.totalorder %s426, 1
        %s430 = scalar_select %p429, %s426, 1
        %s431 = smul.addr %s428, 4
        %s432 = sadd.s32 %s430, %s431
        %s433 = smul.addr %s432, 8
        %s434 = scalar_lea.vmem %s3, %s433
      $region44: #{_lambda_.1} parent=39 // pred_fallthru
        _
    $region40: #{_lambda_.1} parent=5 // pred_fallthru
      _
  $region6: #{_lambda_.1} parent=0 // loop_footer
    %s13 = sadd.s32 1, %s9
  $region7: #{_lambda_.1} parent=0 // loop_footer_branch
    %8 = sbr.rel target = $region3
  $region8: #{_lambda_.1} parent=0 // loop_exit
    _

</llo_original>
